<compile_context>
chip_gen: v5e
topology: v5e:2x2
jax: 0.10.0
libtpu: 0.0.40
codegen_flags: <defaults>
</compile_context>

<pallas_src>
import functools

import jax
import jax.numpy as jnp
from jax.experimental import pallas as pl
from jax.experimental.pallas import tpu as pltpu

# Logical (PyTorch) dims
D_IN, D_H1, D_H2, D_OUT = 312, 256, 224, 200
# Lane-padded dims (multiples of 128)
D_IN_P, D_H1_P, D_H2_P, D_OUT_P = 384, 256, 256, 256


def _round_up(n, m):
    return ((n + m - 1) // m) * m


def _mlp_kernel(x_ref, w1_ref, b1_ref, w2_ref, b2_ref, w3_ref, b3_ref, o_ref):
    # x_ref: [TB, 384] bf16 tile of the batch; weights (bf16) / biases (f32)
    # are full-resident in VMEM. All matmuls accumulate in f32 on the MXU;
    # bias-add / ReLU stay in f32 on the VPU (important for v5e, which has
    # no bf16 VALU).
    x = x_ref[...]                                                   # bf16

    h1 = jnp.dot(x, w1_ref[...], preferred_element_type=jnp.float32)
    h1 = jnp.maximum(h1 + b1_ref[...], 0.0)                          # f32

    h2 = jnp.dot(h1.astype(jnp.bfloat16), w2_ref[...],
                 preferred_element_type=jnp.float32)
    h2 = jnp.maximum(h2 + b2_ref[...], 0.0)                          # f32

    h3 = jnp.dot(h2.astype(jnp.bfloat16), w3_ref[...],
                 preferred_element_type=jnp.float32)
    o_ref[...] = (h3 + b3_ref[...]).astype(o_ref.dtype)


@functools.partial(jax.jit, static_argnames=("tb_eff", "b_pad"))
def _forward_padded(x, w1, b1, w2, b2, w3, b3, *, tb_eff, b_pad):
    B = x.shape[0]

    def pad2(a, rows, cols):
        return jnp.pad(a, ((0, rows - a.shape[0]), (0, cols - a.shape[1])))

    # Zero-pad features / batch; weights + x -> bf16, biases stay f32.
    x_p = pad2(x, b_pad, D_IN_P).astype(jnp.bfloat16)
    w1_p = pad2(w1, D_IN_P, D_H1_P).astype(jnp.bfloat16)
    w2_p = pad2(w2, D_H1_P, D_H2_P).astype(jnp.bfloat16)
    w3_p = pad2(w3, D_H2_P, D_OUT_P).astype(jnp.bfloat16)
    b1_p = pad2(b1, 1, D_H1_P).astype(jnp.float32)
    b2_p = pad2(b2, 1, D_H2_P).astype(jnp.float32)
    b3_p = pad2(b3, 1, D_OUT_P).astype(jnp.float32)

    grid = (b_pad // tb_eff,)

    def batch_map(i):
        return (i, 0)

    def fixed_map(i):
        return (0, 0)

    out_p = pl.pallas_call(
        _mlp_kernel,
        out_shape=jax.ShapeDtypeStruct((b_pad, D_OUT_P), jnp.float32),
        grid_spec=pltpu.PrefetchScalarGridSpec(
            num_scalar_prefetch=0,
            grid=grid,
            in_specs=[
                pl.BlockSpec((tb_eff, D_IN_P), batch_map),    # x tile (bf16)
                pl.BlockSpec((D_IN_P, D_H1_P), fixed_map),    # W1 (bf16)
                pl.BlockSpec((1, D_H1_P), fixed_map),         # b1 (f32)
                pl.BlockSpec((D_H1_P, D_H2_P), fixed_map),    # W2 (bf16)
                pl.BlockSpec((1, D_H2_P), fixed_map),         # b2 (f32)
                pl.BlockSpec((D_H2_P, D_OUT_P), fixed_map),   # W3 (bf16)
                pl.BlockSpec((1, D_OUT_P), fixed_map),        # b3 (f32)
            ],
            out_specs=pl.BlockSpec((tb_eff, D_OUT_P), batch_map),
        ),
        compiler_params=pltpu.CompilerParams(
            dimension_semantics=("parallel",),
            vmem_limit_bytes=64 << 20,
        ),
    )(x_p, w1_p, b1_p, w2_p, b2_p, w3_p, b3_p)

    # Slice away batch + lane padding.
    return out_p[:B, :D_OUT]


def prediction_model_forward(x, params, *, tb=512):
    """x: [B, 312] float32. params: unpadded f32 (W[in,out], b[1,out]) x3.

    Returns logits [B, 200] float32.
    """
    w1, b1, w2, b2, w3, b3 = params
    B = x.shape[0]

    # Big tile (512) for throughput; single-step grid for small batches.
    tb_eff = tb if B >= tb else _round_up(B, 8)
    b_pad = _round_up(B, tb_eff)

    return _forward_padded(x, w1, b1, w2, b2, w3, b3,
                           tb_eff=tb_eff, b_pad=b_pad)


def init_params(key):
    """Deterministic init mimicking nn.Linear's uniform(-1/sqrt(fan_in)) ranges."""
    ks = jax.random.split(key, 6)

    def linear(kw, kb, fan_in, fan_out):
        bound = 1.0 / jnp.sqrt(fan_in)
        # stored as [in, out] so kernel does x @ W
        w = jax.random.uniform(kw, (fan_in, fan_out), jnp.float32, -bound, bound)
        b = jax.random.uniform(kb, (1, fan_out), jnp.float32, -bound, bound)
        return w, b

    w1, b1 = linear(ks[0], ks[1], D_IN, D_H1)
    w2, b2 = linear(ks[2], ks[3], D_H1, D_H2)
    w3, b3 = linear(ks[4], ks[5], D_H2, D_OUT)
    return (w1, b1, w2, b2, w3, b3)


def reference_forward(x, params):
    w1, b1, w2, b2, w3, b3 = params
    h = jnp.maximum(x @ w1 + b1, 0.0)
    h = jnp.maximum(h @ w2 + b2, 0.0)
    return h @ w3 + b3


if __name__ == "__main__":
    key = jax.random.PRNGKey(0)
    k_param, k_x = jax.random.split(key)

    params = init_params(k_param)
    x = jax.random.normal(k_x, (8, D_IN), dtype=jnp.float32)  # batch=8

    out = prediction_model_forward(x, params)
    out = jax.block_until_ready(out)

    ref = reference_forward(x, params)
    assert out.shape == (8, D_OUT)
    # bf16 matmul inputs with f32 accumulation -> slightly looser tolerance
    assert jnp.allclose(out, ref, atol=5e-2, rtol=5e-2), "mismatch vs reference"

    print("KERNEL_OK")
</pallas_src>

<mosaic_0001>
module attributes {stable_mosaic.version = 11 : i64} {
  func.func @_mlp_kernel(%arg0: i32, %arg1: memref<8x384xbf16, #tpu.memory_space<vmem>>, %arg2: memref<384x256xbf16, #tpu.memory_space<vmem>>, %arg3: memref<1x256xf32, #tpu.memory_space<vmem>>, %arg4: memref<256x256xbf16, #tpu.memory_space<vmem>>, %arg5: memref<1x256xf32, #tpu.memory_space<vmem>>, %arg6: memref<256x256xbf16, #tpu.memory_space<vmem>>, %arg7: memref<1x256xf32, #tpu.memory_space<vmem>>, %arg8: memref<8x256xf32, #tpu.memory_space<vmem>>) attributes {dimension_semantics = [#tpu.dimension_semantics<parallel>], iteration_bounds = array<i64: 1>, scalar_prefetch = 0 : i64, scratch_operands = 0 : i64, tpu.core_type = #tpu.core_type<tc>, window_params = [{transform_indices = @transform_0, window_bounds = array<i64: 8, 384>}, {pipeline_mode = #tpu.pipeline_mode<synchronous>, transform_indices = @transform_1, window_bounds = array<i64: 384, 256>}, {pipeline_mode = #tpu.pipeline_mode<synchronous>, transform_indices = @transform_2, window_bounds = array<i64: 1, 256>}, {pipeline_mode = #tpu.pipeline_mode<synchronous>, transform_indices = @transform_3, window_bounds = array<i64: 256, 256>}, {pipeline_mode = #tpu.pipeline_mode<synchronous>, transform_indices = @transform_4, window_bounds = array<i64: 1, 256>}, {pipeline_mode = #tpu.pipeline_mode<synchronous>, transform_indices = @transform_5, window_bounds = array<i64: 256, 256>}, {pipeline_mode = #tpu.pipeline_mode<synchronous>, transform_indices = @transform_6, window_bounds = array<i64: 1, 256>}, {transform_indices = @transform_7, window_bounds = array<i64: 8, 256>}]} {
    %c0 = arith.constant 0 : index
    %c0_0 = arith.constant 0 : index
    %0 = vector.load %arg1[%c0, %c0_0] : memref<8x384xbf16, #tpu.memory_space<vmem>>, vector<8x384xbf16>
    %c0_1 = arith.constant 0 : index
    %c0_2 = arith.constant 0 : index
    %1 = vector.load %arg2[%c0_1, %c0_2] : memref<384x256xbf16, #tpu.memory_space<vmem>>, vector<384x256xbf16>
    %cst = arith.constant dense<0.000000e+00> : vector<8x256xf32>
    %2 = tpu.matmul %0, %1, %cst {dimension_numbers = #tpu.dot_dimension_numbers<[1], [0], [0], [1], [0, 0, 1, 1], [], []>} : vector<8x384xbf16>, vector<384x256xbf16>, vector<8x256xf32> -> vector<8x256xf32>
    %c0_3 = arith.constant 0 : index
    %c0_4 = arith.constant 0 : index
    %3 = vector.load %arg3[%c0_3, %c0_4] : memref<1x256xf32, #tpu.memory_space<vmem>>, vector<1x256xf32>
    %4 = vector.broadcast %3 : vector<1x256xf32> to vector<8x256xf32>
    %5 = arith.addf %2, %4 : vector<8x256xf32>
    %cst_5 = arith.constant 0.000000e+00 : f32
    %6 = vector.broadcast %cst_5 : f32 to vector<8x256xf32>
    %7 = arith.maximumf %5, %6 : vector<8x256xf32>
    %8 = arith.truncf %7 : vector<8x256xf32> to vector<8x256xbf16>
    %c0_6 = arith.constant 0 : index
    %c0_7 = arith.constant 0 : index
    %9 = vector.load %arg4[%c0_6, %c0_7] : memref<256x256xbf16, #tpu.memory_space<vmem>>, vector<256x256xbf16>
    %cst_8 = arith.constant dense<0.000000e+00> : vector<8x256xf32>
    %10 = tpu.matmul %8, %9, %cst_8 {dimension_numbers = #tpu.dot_dimension_numbers<[1], [0], [0], [1], [0, 0, 1, 1], [], []>} : vector<8x256xbf16>, vector<256x256xbf16>, vector<8x256xf32> -> vector<8x256xf32>
    %c0_9 = arith.constant 0 : index
    %c0_10 = arith.constant 0 : index
    %11 = vector.load %arg5[%c0_9, %c0_10] : memref<1x256xf32, #tpu.memory_space<vmem>>, vector<1x256xf32>
    %12 = vector.broadcast %11 : vector<1x256xf32> to vector<8x256xf32>
    %13 = arith.addf %10, %12 : vector<8x256xf32>
    %cst_11 = arith.constant 0.000000e+00 : f32
    %14 = vector.broadcast %cst_11 : f32 to vector<8x256xf32>
    %15 = arith.maximumf %13, %14 : vector<8x256xf32>
    %16 = arith.truncf %15 : vector<8x256xf32> to vector<8x256xbf16>
    %c0_12 = arith.constant 0 : index
    %c0_13 = arith.constant 0 : index
    %17 = vector.load %arg6[%c0_12, %c0_13] : memref<256x256xbf16, #tpu.memory_space<vmem>>, vector<256x256xbf16>
    %cst_14 = arith.constant dense<0.000000e+00> : vector<8x256xf32>
    %18 = tpu.matmul %16, %17, %cst_14 {dimension_numbers = #tpu.dot_dimension_numbers<[1], [0], [0], [1], [0, 0, 1, 1], [], []>} : vector<8x256xbf16>, vector<256x256xbf16>, vector<8x256xf32> -> vector<8x256xf32>
    %c0_15 = arith.constant 0 : index
    %c0_16 = arith.constant 0 : index
    %19 = vector.load %arg7[%c0_15, %c0_16] : memref<1x256xf32, #tpu.memory_space<vmem>>, vector<1x256xf32>
    %20 = vector.broadcast %19 : vector<1x256xf32> to vector<8x256xf32>
    %21 = arith.addf %18, %20 : vector<8x256xf32>
    %c0_17 = arith.constant 0 : index
    %c0_18 = arith.constant 0 : index
    %22 = vector.load %arg8[%c0_17, %c0_18] : memref<8x256xf32, #tpu.memory_space<vmem>>, vector<8x256xf32>
    tpu.vector_store %arg8[%c0_17, %c0_18], %21 {strides = array<i32>} : memref<8x256xf32, #tpu.memory_space<vmem>>, vector<8x256xf32>,
    return
  }
  func.func @transform_0(%arg0: i32) -> (i32, i32) {
    %c0_i32 = arith.constant 0 : i32
    %c0_i32_0 = arith.constant 0 : i32
    return %arg0, %c0_i32 : i32, i32
  }
  func.func @transform_1(%arg0: i32) -> (i32, i32) {
    %c0_i32 = arith.constant 0 : i32
    %c0_i32_0 = arith.constant 0 : i32
    %c0_i32_1 = arith.constant 0 : i32
    return %c0_i32, %c0_i32_0 : i32, i32
  }
  func.func @transform_2(%arg0: i32) -> (i32, i32) {
    %c0_i32 = arith.constant 0 : i32
    %c0_i32_0 = arith.constant 0 : i32
    %c0_i32_1 = arith.constant 0 : i32
    return %c0_i32, %c0_i32_0 : i32, i32
  }
  func.func @transform_3(%arg0: i32) -> (i32, i32) {
    %c0_i32 = arith.constant 0 : i32
    %c0_i32_0 = arith.constant 0 : i32
    %c0_i32_1 = arith.constant 0 : i32
    return %c0_i32, %c0_i32_0 : i32, i32
  }
  func.func @transform_4(%arg0: i32) -> (i32, i32) {
    %c0_i32 = arith.constant 0 : i32
    %c0_i32_0 = arith.constant 0 : i32
    %c0_i32_1 = arith.constant 0 : i32
    return %c0_i32, %c0_i32_0 : i32, i32
  }
  func.func @transform_5(%arg0: i32) -> (i32, i32) {
    %c0_i32 = arith.constant 0 : i32
    %c0_i32_0 = arith.constant 0 : i32
    %c0_i32_1 = arith.constant 0 : i32
    return %c0_i32, %c0_i32_0 : i32, i32
  }
  func.func @transform_6(%arg0: i32) -> (i32, i32) {
    %c0_i32 = arith.constant 0 : i32
    %c0_i32_0 = arith.constant 0 : i32
    %c0_i32_1 = arith.constant 0 : i32
    return %c0_i32, %c0_i32_0 : i32, i32
  }
  func.func @transform_7(%arg0: i32) -> (i32, i32) {
    %c0_i32 = arith.constant 0 : i32
    %c0_i32_0 = arith.constant 0 : i32
    return %arg0, %c0_i32 : i32, i32
  }
}

</mosaic_0001>

<llo_original>
// kernel: _forward_padded.1
$region0: #{_forward_padded.1}
  #allocation0 [shape = 'u32[]', space=smem, size = 0x4, offset = 0x4, fixed_abs, tag = 'smem constant byte address 0x4 - core index']
  #allocation1 [shape = 'u32[72,128]{1,0:T(1,128)}', space=vmem, size = 0x9000, scoped, tag = 'internal scratch']
  %s0 = inlined_call_operand.vmem [shape: bf16[8,384], index: 0, kind: input, shape index: {}]
  %s1 = inlined_call_operand.vmem [shape: bf16[384,256], index: 1, kind: input, shape index: {}]
  %s2 = inlined_call_operand.vmem [shape: f32[1,256], index: 2, kind: input, shape index: {}]
  %s3 = inlined_call_operand.vmem [shape: bf16[256,256], index: 3, kind: input, shape index: {}]
  %s4 = inlined_call_operand.vmem [shape: f32[1,256], index: 4, kind: input, shape index: {}]
  %s5 = inlined_call_operand.vmem [shape: bf16[256,256], index: 5, kind: input, shape index: {}]
  %s6 = inlined_call_operand.vmem [shape: f32[1,256], index: 6, kind: input, shape index: {}]
  %s7 = inlined_call_operand.hbm [shape: f32[8,256], index: 7, kind: output, shape index: {}]
  %s8 = sld [smem:[#allocation0]]
  $region38: #{_forward_padded.1} parent=0
    _
  %s10 = ssub.s32 1, %s8
  %s11 = scalar_select 0, %s10, %s8
  $region1: #{_forward_padded.1} parent=0
    #allocation2 [shape = 'u8[8192]{0}', space=vmem, size = 0x2000, scoped, tag = 'output window, operand 0, single buffered']
    #allocation3 [shape = 's32[1]{0}', space=sflag, size = 0x4, scoped, tag = 'scoped memory for _forward_padded.1']
    %12 = vsyncpa [#allocation3], 0
    // Predicated region
    $region2: #{_forward_padded.1} parent=1 // pred_check
      _
    $region3: #{_forward_padded.1} parent=1 // pred_check_branch
      %14 = sbr.rel (0) target = $region5
    $region4: #{_forward_padded.1} parent=1 // pred_region
      _
    $region5: #{_forward_padded.1} parent=1 // pred_fallthru
      _
    // Predicated region
    $region6: #{_forward_padded.1} parent=1 // pred_check
      _
    $region7: #{_forward_padded.1} parent=1 // pred_check_branch
      %16 = sbr.rel (0) target = $region9
    $region8: #{_forward_padded.1} parent=1 // pred_region
      _
    $region9: #{_forward_padded.1} parent=1 // pred_fallthru
      _
    // Predicated region
    $region10: #{_forward_padded.1} parent=1 // pred_check
      _
    $region11: #{_forward_padded.1} parent=1 // pred_check_branch
      %18 = sbr.rel (0) target = $region13
    $region12: #{_forward_padded.1} parent=1 // pred_region
      _
    $region13: #{_forward_padded.1} parent=1 // pred_fallthru
      _
    // Predicated region
    $region14: #{_forward_padded.1} parent=1 // pred_check
      _
    $region15: #{_forward_padded.1} parent=1 // pred_check_branch
      %20 = sbr.rel (0) target = $region17
    $region16: #{_forward_padded.1} parent=1 // pred_region
      _
    $region17: #{_forward_padded.1} parent=1 // pred_fallthru
      _
    // Predicated region
    $region18: #{_forward_padded.1} parent=1 // pred_check
      _
    $region19: #{_forward_padded.1} parent=1 // pred_check_branch
      %22 = sbr.rel (0) target = $region21
    $region20: #{_forward_padded.1} parent=1 // pred_region
      _
    $region21: #{_forward_padded.1} parent=1 // pred_fallthru
      _
    // Predicated region
    $region22: #{_forward_padded.1} parent=1 // pred_check
      _
    $region23: #{_forward_padded.1} parent=1 // pred_check_branch
      %24 = sbr.rel (0) target = $region25
    $region24: #{_forward_padded.1} parent=1 // pred_region
      _
    $region25: #{_forward_padded.1} parent=1 // pred_fallthru
      _
    // Predicated region
    $region26: #{_forward_padded.1} parent=1 // pred_check
      _
    $region27: #{_forward_padded.1} parent=1 // pred_check_branch
      %26 = sbr.rel (0) target = $region29
    $region28: #{_forward_padded.1} parent=1 // pred_region
      _
    $region29: #{_forward_padded.1} parent=1 // pred_fallthru
      _
    %v27 = vld [vmem:[%s0] sm:$0xff]
    %v28 = vld [vmem:[%s0 + $0x8] sm:$0xf]
    %v29 = vld [vmem:[%s1] sm:$0xff]
    %v30 = vld [vmem:[%s1 + $0x8] sm:$0xff]
    %v31 = vld [vmem:[%s1 + $0x10] sm:$0xff]
    %v32 = vld [vmem:[%s1 + $0x18] sm:$0xff]
    %v33 = vld [vmem:[%s1 + $0x20] sm:$0xff]
    %v34 = vld [vmem:[%s1 + $0x28] sm:$0xff]
    %v35 = vld [vmem:[%s1 + $0x30] sm:$0xff]
    %v36 = vld [vmem:[%s1 + $0x38] sm:$0xff]
    %v37 = vld [vmem:[%s1 + $0x40] sm:$0xff]
    %v38 = vld [vmem:[%s1 + $0x48] sm:$0xff]
    %v39 = vld [vmem:[%s1 + $0x50] sm:$0xff]
    %v40 = vld [vmem:[%s1 + $0x58] sm:$0xff]
    %v41 = vld [vmem:[%s1 + $0x60] sm:$0xff]
    %v42 = vld [vmem:[%s1 + $0x68] sm:$0xff]
    %v43 = vld [vmem:[%s1 + $0x70] sm:$0xff]
    %v44 = vld [vmem:[%s1 + $0x78] sm:$0xff]
    %v45 = vld [vmem:[%s1 + $0x80] sm:$0xff]
    %v46 = vld [vmem:[%s1 + $0x88] sm:$0xff]
    %v47 = vld [vmem:[%s1 + $0x90] sm:$0xff]
    %v48 = vld [vmem:[%s1 + $0x98] sm:$0xff]
    %v49 = vld [vmem:[%s1 + $0xa0] sm:$0xff]
    %v50 = vld [vmem:[%s1 + $0xa8] sm:$0xff]
    %v51 = vld [vmem:[%s1 + $0xb0] sm:$0xff]
    %v52 = vld [vmem:[%s1 + $0xb8] sm:$0xff]
    %v53 = vld [vmem:[%s1 + $0xc0] sm:$0xff]
    %v54 = vld [vmem:[%s1 + $0xc8] sm:$0xff]
    %v55 = vld [vmem:[%s1 + $0xd0] sm:$0xff]
    %v56 = vld [vmem:[%s1 + $0xd8] sm:$0xff]
    %v57 = vld [vmem:[%s1 + $0xe0] sm:$0xff]
    %v58 = vld [vmem:[%s1 + $0xe8] sm:$0xff]
    %v59 = vld [vmem:[%s1 + $0xf0] sm:$0xff]
    %v60 = vld [vmem:[%s1 + $0xf8] sm:$0xff]
    %v61 = vld [vmem:[%s1 + $0x100] sm:$0xff]
    %v62 = vld [vmem:[%s1 + $0x108] sm:$0xff]
    %v63 = vld [vmem:[%s1 + $0x110] sm:$0xff]
    %v64 = vld [vmem:[%s1 + $0x118] sm:$0xff]
    %v65 = vld [vmem:[%s1 + $0x120] sm:$0xff]
    %v66 = vld [vmem:[%s1 + $0x128] sm:$0xff]
    %v67 = vld [vmem:[%s1 + $0x130] sm:$0xff]
    %v68 = vld [vmem:[%s1 + $0x138] sm:$0xff]
    %v69 = vld [vmem:[%s1 + $0x140] sm:$0xff]
    %v70 = vld [vmem:[%s1 + $0x148] sm:$0xff]
    %v71 = vld [vmem:[%s1 + $0x150] sm:$0xff]
    %v72 = vld [vmem:[%s1 + $0x158] sm:$0xff]
    %v73 = vld [vmem:[%s1 + $0x160] sm:$0xff]
    %v74 = vld [vmem:[%s1 + $0x168] sm:$0xff]
    %v75 = vld [vmem:[%s1 + $0x170] sm:$0xff]
    %v76 = vld [vmem:[%s1 + $0x178] sm:$0xff]
    %v77 = vld [vmem:[%s2] sm:$0x3]
    %v79 = vperm.slane %v77, 0
    %v80 = vperm.slane %v77, 1
    %v85 = vunpack.c.l.b16 %v27
    %v86 = vunpack.c.h.b16 %v27
    %v87 = vunpack.c.l.b16 %v28
    %v88 = vpack.c.b16 %v85, %v85
    %v89 = vpack.c.b16 %v86, %v86
    %v90 = vpack.c.b16 %v87, %v87
    %v142 = vunpack.c.l.b16 %v29
    %v143 = vunpack.c.h.b16 %v29
    %v144 = vunpack.c.l.b16 %v30
    %v145 = vunpack.c.h.b16 %v30
    %v146 = vunpack.c.l.b16 %v31
    %v147 = vunpack.c.h.b16 %v31
    %v148 = vunpack.c.l.b16 %v32
    %v149 = vunpack.c.h.b16 %v32
    %v150 = vunpack.c.l.b16 %v33
    %v151 = vunpack.c.h.b16 %v33
    %v152 = vunpack.c.l.b16 %v34
    %v153 = vunpack.c.h.b16 %v34
    %v154 = vunpack.c.l.b16 %v35
    %v155 = vunpack.c.h.b16 %v35
    %v156 = vunpack.c.l.b16 %v36
    %v157 = vunpack.c.h.b16 %v36
    %v158 = vunpack.c.l.b16 %v37
    %v159 = vunpack.c.h.b16 %v37
    %v160 = vunpack.c.l.b16 %v38
    %v161 = vunpack.c.h.b16 %v38
    %v162 = vunpack.c.l.b16 %v39
    %v163 = vunpack.c.h.b16 %v39
    %v164 = vunpack.c.l.b16 %v40
    %v165 = vunpack.c.h.b16 %v40
    %v166 = vunpack.c.l.b16 %v41
    %v167 = vunpack.c.h.b16 %v41
    %v168 = vunpack.c.l.b16 %v42
    %v169 = vunpack.c.h.b16 %v42
    %v170 = vunpack.c.l.b16 %v43
    %v171 = vunpack.c.h.b16 %v43
    %v172 = vunpack.c.l.b16 %v44
    %v173 = vunpack.c.h.b16 %v44
    %v174 = vunpack.c.l.b16 %v45
    %v175 = vunpack.c.h.b16 %v45
    %v176 = vunpack.c.l.b16 %v46
    %v177 = vunpack.c.h.b16 %v46
    %v178 = vunpack.c.l.b16 %v47
    %v179 = vunpack.c.h.b16 %v47
    %v180 = vunpack.c.l.b16 %v48
    %v181 = vunpack.c.h.b16 %v48
    %v182 = vunpack.c.l.b16 %v49
    %v183 = vunpack.c.h.b16 %v49
    %v184 = vunpack.c.l.b16 %v50
    %v185 = vunpack.c.h.b16 %v50
    %v186 = vunpack.c.l.b16 %v51
    %v187 = vunpack.c.h.b16 %v51
    %v188 = vunpack.c.l.b16 %v52
    %v189 = vunpack.c.h.b16 %v52
    %v190 = vunpack.c.l.b16 %v53
    %v191 = vunpack.c.h.b16 %v53
    %v192 = vunpack.c.l.b16 %v54
    %v193 = vunpack.c.h.b16 %v54
    %v194 = vunpack.c.l.b16 %v55
    %v195 = vunpack.c.h.b16 %v55
    %v196 = vunpack.c.l.b16 %v56
    %v197 = vunpack.c.h.b16 %v56
    %v198 = vunpack.c.l.b16 %v57
    %v199 = vunpack.c.h.b16 %v57
    %v200 = vunpack.c.l.b16 %v58
    %v201 = vunpack.c.h.b16 %v58
    %v202 = vunpack.c.l.b16 %v59
    %v203 = vunpack.c.h.b16 %v59
    %v204 = vunpack.c.l.b16 %v60
    %v205 = vunpack.c.h.b16 %v60
    %v206 = vunpack.c.l.b16 %v61
    %v207 = vunpack.c.h.b16 %v61
    %v208 = vunpack.c.l.b16 %v62
    %v209 = vunpack.c.h.b16 %v62
    %v210 = vunpack.c.l.b16 %v63
    %v211 = vunpack.c.h.b16 %v63
    %v212 = vunpack.c.l.b16 %v64
    %v213 = vunpack.c.h.b16 %v64
    %v214 = vunpack.c.l.b16 %v65
    %v215 = vunpack.c.h.b16 %v65
    %v216 = vunpack.c.l.b16 %v66
    %v217 = vunpack.c.h.b16 %v66
    %v218 = vunpack.c.l.b16 %v67
    %v219 = vunpack.c.h.b16 %v67
    %v220 = vunpack.c.l.b16 %v68
    %v221 = vunpack.c.h.b16 %v68
    %v222 = vunpack.c.l.b16 %v69
    %v223 = vunpack.c.h.b16 %v69
    %v224 = vunpack.c.l.b16 %v70
    %v225 = vunpack.c.h.b16 %v70
    %v226 = vunpack.c.l.b16 %v71
    %v227 = vunpack.c.h.b16 %v71
    %v228 = vunpack.c.l.b16 %v72
    %v229 = vunpack.c.h.b16 %v72
    %v230 = vunpack.c.l.b16 %v73
    %v231 = vunpack.c.h.b16 %v73
    %v232 = vunpack.c.l.b16 %v74
    %v233 = vunpack.c.h.b16 %v74
    %v234 = vunpack.c.l.b16 %v75
    %v235 = vunpack.c.h.b16 %v75
    %v236 = vunpack.c.l.b16 %v76
    %v237 = vunpack.c.h.b16 %v76
    %v238 = vpack.c.b16 %v144, %v142
    %v239 = vpack.c.b16 %v145, %v143
    %v240 = vpack.c.b16 %v148, %v146
    %v241 = vpack.c.b16 %v149, %v147
    %v242 = vpack.c.b16 %v152, %v150
    %v243 = vpack.c.b16 %v153, %v151
    %v244 = vpack.c.b16 %v156, %v154
    %v245 = vpack.c.b16 %v157, %v155
    %v246 = vpack.c.b16 %v160, %v158
    %v247 = vpack.c.b16 %v161, %v159
    %v248 = vpack.c.b16 %v164, %v162
    %v249 = vpack.c.b16 %v165, %v163
    %v250 = vpack.c.b16 %v168, %v166
    %v251 = vpack.c.b16 %v169, %v167
    %v252 = vpack.c.b16 %v172, %v170
    %v253 = vpack.c.b16 %v173, %v171
    %v254 = vpack.c.b16 %v176, %v174
    %v255 = vpack.c.b16 %v177, %v175
    %v256 = vpack.c.b16 %v180, %v178
    %v257 = vpack.c.b16 %v181, %v179
    %v258 = vpack.c.b16 %v184, %v182
    %v259 = vpack.c.b16 %v185, %v183
    %v260 = vpack.c.b16 %v188, %v186
    %v261 = vpack.c.b16 %v189, %v187
    %v262 = vpack.c.b16 %v192, %v190
    %v263 = vpack.c.b16 %v193, %v191
    %v264 = vpack.c.b16 %v196, %v194
    %v265 = vpack.c.b16 %v197, %v195
    %v266 = vpack.c.b16 %v200, %v198
    %v267 = vpack.c.b16 %v201, %v199
    %v268 = vpack.c.b16 %v204, %v202
    %v269 = vpack.c.b16 %v205, %v203
    %v270 = vpack.c.b16 %v208, %v206
    %v271 = vpack.c.b16 %v209, %v207
    %v272 = vpack.c.b16 %v212, %v210
    %v273 = vpack.c.b16 %v213, %v211
    %v274 = vpack.c.b16 %v216, %v214
    %v275 = vpack.c.b16 %v217, %v215
    %v276 = vpack.c.b16 %v220, %v218
    %v277 = vpack.c.b16 %v221, %v219
    %v278 = vpack.c.b16 %v224, %v222
    %v279 = vpack.c.b16 %v225, %v223
    %v280 = vpack.c.b16 %v228, %v226
    %v281 = vpack.c.b16 %v229, %v227
    %v282 = vpack.c.b16 %v232, %v230
    %v283 = vpack.c.b16 %v233, %v231
    %v284 = vpack.c.b16 %v236, %v234
    %v285 = vpack.c.b16 %v237, %v235
    %334 = vmatpush.bf16.msra.mxu0 %v252
    %335 = vmatpush.bf16.msra.mxu0 %v250
    %336 = vmatpush.bf16.msra.mxu0 %v248
    %337 = vmatpush.bf16.msra.mxu0 %v246
    %338 = vmatpush.bf16.msra.mxu0 %v244
    %339 = vmatpush.bf16.msra.mxu0 %v242
    %340 = vmatpush.bf16.msra.mxu0 %v240
    %341 = vmatpush.bf16.msra.mxu0 %v238
    %342 = vmatmul.bf16.gmra.mxu0 %v88
    %v343 = vpop.f32.mrf.mxu0
    %v344 = vadd.f32 %v79, %v343
    %v345 = vpop.f32.mrf.mxu0
    %346 = vdwg.mxu0
    %347 = vmatpush.bf16.msra.mxu0 %v268
    %348 = vmatpush.bf16.msra.mxu0 %v266
    %349 = vmatpush.bf16.msra.mxu0 %v264
    %350 = vmatpush.bf16.msra.mxu0 %v262
    %351 = vmatpush.bf16.msra.mxu0 %v260
    %352 = vmatpush.bf16.msra.mxu0 %v258
    %353 = vmatpush.bf16.msra.mxu0 %v256
    %354 = vmatpush.bf16.msra.mxu0 %v254
    %355 = vmatmul.bf16.gmra.mxu0 %v89
    %v356 = vpop.f32.mrf.mxu0
    %v357 = vadd.f32 %v344, %v356
    %v358 = vpop.f32.mrf.mxu0
    %359 = vdwg.mxu0
    %360 = vmatpush.bf16.msra.mxu0 %v284
    %361 = vmatpush.bf16.msra.mxu0 %v282
    %362 = vmatpush.bf16.msra.mxu0 %v280
    %363 = vmatpush.bf16.msra.mxu0 %v278
    %364 = vmatpush.bf16.msra.mxu0 %v276
    %365 = vmatpush.bf16.msra.mxu0 %v274
    %366 = vmatpush.bf16.msra.mxu0 %v272
    %367 = vmatpush.bf16.msra.mxu0 %v270
    %368 = vmatmul.bf16.gmra.mxu0 %v90
    %v369 = vpop.f32.mrf.mxu0
    %v370 = vadd.f32 %v357, %v369
    %v371 = vpop.f32.mrf.mxu0
    %372 = vdwg.mxu0
    %373 = vmatpush.bf16.msra.mxu0 %v253
    %374 = vmatpush.bf16.msra.mxu0 %v251
    %375 = vmatpush.bf16.msra.mxu0 %v249
    %376 = vmatpush.bf16.msra.mxu0 %v247
    %377 = vmatpush.bf16.msra.mxu0 %v245
    %378 = vmatpush.bf16.msra.mxu0 %v243
    %379 = vmatpush.bf16.msra.mxu0 %v241
    %380 = vmatpush.bf16.msra.mxu0 %v239
    %381 = vmatmul.bf16.gmra.mxu0 %v88
    %v382 = vpop.f32.mrf.mxu0
    %v383 = vadd.f32 %v80, %v382
    %v384 = vpop.f32.mrf.mxu0
    %385 = vdwg.mxu0
    %386 = vmatpush.bf16.msra.mxu0 %v269
    %387 = vmatpush.bf16.msra.mxu0 %v267
    %388 = vmatpush.bf16.msra.mxu0 %v265
    %389 = vmatpush.bf16.msra.mxu0 %v263
    %390 = vmatpush.bf16.msra.mxu0 %v261
    %391 = vmatpush.bf16.msra.mxu0 %v259
    %392 = vmatpush.bf16.msra.mxu0 %v257
    %393 = vmatpush.bf16.msra.mxu0 %v255
    %394 = vmatmul.bf16.gmra.mxu0 %v89
    %v395 = vpop.f32.mrf.mxu0
    %v396 = vadd.f32 %v383, %v395
    %v397 = vpop.f32.mrf.mxu0
    %398 = vdwg.mxu0
    %399 = vmatpush.bf16.msra.mxu0 %v285
    %400 = vmatpush.bf16.msra.mxu0 %v283
    %401 = vmatpush.bf16.msra.mxu0 %v281
    %402 = vmatpush.bf16.msra.mxu0 %v279
    %403 = vmatpush.bf16.msra.mxu0 %v277
    %404 = vmatpush.bf16.msra.mxu0 %v275
    %405 = vmatpush.bf16.msra.mxu0 %v273
    %406 = vmatpush.bf16.msra.mxu0 %v271
    %407 = vmatmul.bf16.gmra.mxu0 %v90
    %v408 = vpop.f32.mrf.mxu0
    %v409 = vadd.f32 %v396, %v408
    %v410 = vpop.f32.mrf.mxu0
    %411 = vdwg.mxu0
    %v412 = vmax.f32 %v370, 0.0
    %v413 = vmax.f32 %v409, 0.0
    %v414 = vpack.c.bf16 %v412, %v412
    %v415 = vpack.c.bf16 %v413, %v413
    %v416 = vld [vmem:[%s3] sm:$0xff]
    %v417 = vld [vmem:[%s3 + $0x8] sm:$0xff]
    %v418 = vld [vmem:[%s3 + $0x10] sm:$0xff]
    %v419 = vld [vmem:[%s3 + $0x18] sm:$0xff]
    %v420 = vld [vmem:[%s3 + $0x20] sm:$0xff]
    %v421 = vld [vmem:[%s3 + $0x28] sm:$0xff]
    %v422 = vld [vmem:[%s3 + $0x30] sm:$0xff]
    %v423 = vld [vmem:[%s3 + $0x38] sm:$0xff]
    %v424 = vld [vmem:[%s3 + $0x40] sm:$0xff]
    %v425 = vld [vmem:[%s3 + $0x48] sm:$0xff]
    %v426 = vld [vmem:[%s3 + $0x50] sm:$0xff]
    %v427 = vld [vmem:[%s3 + $0x58] sm:$0xff]
    %v428 = vld [vmem:[%s3 + $0x60] sm:$0xff]
    %v429 = vld [vmem:[%s3 + $0x68] sm:$0xff]
    %v430 = vld [vmem:[%s3 + $0x70] sm:$0xff]
    %v431 = vld [vmem:[%s3 + $0x78] sm:$0xff]
    %v432 = vld [vmem:[%s3 + $0x80] sm:$0xff]
    %v433 = vld [vmem:[%s3 + $0x88] sm:$0xff]
    %v434 = vld [vmem:[%s3 + $0x90] sm:$0xff]
    %v435 = vld [vmem:[%s3 + $0x98] sm:$0xff]
    %v436 = vld [vmem:[%s3 + $0xa0] sm:$0xff]
    %v437 = vld [vmem:[%s3 + $0xa8] sm:$0xff]
    %v438 = vld [vmem:[%s3 + $0xb0] sm:$0xff]
    %v439 = vld [vmem:[%s3 + $0xb8] sm:$0xff]
    %v440 = vld [vmem:[%s3 + $0xc0] sm:$0xff]
    %v441 = vld [vmem:[%s3 + $0xc8] sm:$0xff]
    %v442 = vld [vmem:[%s3 + $0xd0] sm:$0xff]
    %v443 = vld [vmem:[%s3 + $0xd8] sm:$0xff]
    %v444 = vld [vmem:[%s3 + $0xe0] sm:$0xff]
    %v445 = vld [vmem:[%s3 + $0xe8] sm:$0xff]
    %v446 = vld [vmem:[%s3 + $0xf0] sm:$0xff]
    %v447 = vld [vmem:[%s3 + $0xf8] sm:$0xff]
    %v448 = vld [vmem:[%s4] sm:$0x3]
    %v450 = vperm.slane %v448, 0
    %v451 = vperm.slane %v448, 1
    %v486 = vunpack.c.l.b16 %v416
    %v487 = vunpack.c.h.b16 %v416
    %v488 = vunpack.c.l.b16 %v417
    %v489 = vunpack.c.h.b16 %v417
    %v490 = vunpack.c.l.b16 %v418
    %v491 = vunpack.c.h.b16 %v418
    %v492 = vunpack.c.l.b16 %v419
    %v493 = vunpack.c.h.b16 %v419
    %v494 = vunpack.c.l.b16 %v420
    %v495 = vunpack.c.h.b16 %v420
    %v496 = vunpack.c.l.b16 %v421
    %v497 = vunpack.c.h.b16 %v421
    %v498 = vunpack.c.l.b16 %v422
    %v499 = vunpack.c.h.b16 %v422
    %v500 = vunpack.c.l.b16 %v423
    %v501 = vunpack.c.h.b16 %v423
    %v502 = vunpack.c.l.b16 %v424
    %v503 = vunpack.c.h.b16 %v424
    %v504 = vunpack.c.l.b16 %v425
    %v505 = vunpack.c.h.b16 %v425
    %v506 = vunpack.c.l.b16 %v426
    %v507 = vunpack.c.h.b16 %v426
    %v508 = vunpack.c.l.b16 %v427
    %v509 = vunpack.c.h.b16 %v427
    %v510 = vunpack.c.l.b16 %v428
    %v511 = vunpack.c.h.b16 %v428
    %v512 = vunpack.c.l.b16 %v429
    %v513 = vunpack.c.h.b16 %v429
    %v514 = vunpack.c.l.b16 %v430
    %v515 = vunpack.c.h.b16 %v430
    %v516 = vunpack.c.l.b16 %v431
    %v517 = vunpack.c.h.b16 %v431
    %v518 = vunpack.c.l.b16 %v432
    %v519 = vunpack.c.h.b16 %v432
    %v520 = vunpack.c.l.b16 %v433
    %v521 = vunpack.c.h.b16 %v433
    %v522 = vunpack.c.l.b16 %v434
    %v523 = vunpack.c.h.b16 %v434
    %v524 = vunpack.c.l.b16 %v435
    %v525 = vunpack.c.h.b16 %v435
    %v526 = vunpack.c.l.b16 %v436
    %v527 = vunpack.c.h.b16 %v436
    %v528 = vunpack.c.l.b16 %v437
    %v529 = vunpack.c.h.b16 %v437
    %v530 = vunpack.c.l.b16 %v438
    %v531 = vunpack.c.h.b16 %v438
    %v532 = vunpack.c.l.b16 %v439
    %v533 = vunpack.c.h.b16 %v439
    %v534 = vunpack.c.l.b16 %v440
    %v535 = vunpack.c.h.b16 %v440
    %v536 = vunpack.c.l.b16 %v441
    %v537 = vunpack.c.h.b16 %v441
    %v538 = vunpack.c.l.b16 %v442
    %v539 = vunpack.c.h.b16 %v442
    %v540 = vunpack.c.l.b16 %v443
    %v541 = vunpack.c.h.b16 %v443
    %v542 = vunpack.c.l.b16 %v444
    %v543 = vunpack.c.h.b16 %v444
    %v544 = vunpack.c.l.b16 %v445
    %v545 = vunpack.c.h.b16 %v445
    %v546 = vunpack.c.l.b16 %v446
    %v547 = vunpack.c.h.b16 %v446
    %v548 = vunpack.c.l.b16 %v447
    %v549 = vunpack.c.h.b16 %v447
    %v550 = vpack.c.b16 %v488, %v486
    %v551 = vpack.c.b16 %v489, %v487
    %v552 = vpack.c.b16 %v492, %v490
    %v553 = vpack.c.b16 %v493, %v491
    %v554 = vpack.c.b16 %v496, %v494
    %v555 = vpack.c.b16 %v497, %v495
    %v556 = vpack.c.b16 %v500, %v498
    %v557 = vpack.c.b16 %v501, %v499
    %v558 = vpack.c.b16 %v504, %v502
    %v559 = vpack.c.b16 %v505, %v503
    %v560 = vpack.c.b16 %v508, %v506
    %v561 = vpack.c.b16 %v509, %v507
    %v562 = vpack.c.b16 %v512, %v510
    %v563 = vpack.c.b16 %v513, %v511
    %v564 = vpack.c.b16 %v516, %v514
    %v565 = vpack.c.b16 %v517, %v515
    %v566 = vpack.c.b16 %v520, %v518
    %v567 = vpack.c.b16 %v521, %v519
    %v568 = vpack.c.b16 %v524, %v522
    %v569 = vpack.c.b16 %v525, %v523
    %v570 = vpack.c.b16 %v528, %v526
    %v571 = vpack.c.b16 %v529, %v527
    %v572 = vpack.c.b16 %v532, %v530
    %v573 = vpack.c.b16 %v533, %v531
    %v574 = vpack.c.b16 %v536, %v534
    %v575 = vpack.c.b16 %v537, %v535
    %v576 = vpack.c.b16 %v540, %v538
    %v577 = vpack.c.b16 %v541, %v539
    %v578 = vpack.c.b16 %v544, %v542
    %v579 = vpack.c.b16 %v545, %v543
    %v580 = vpack.c.b16 %v548, %v546
    %v581 = vpack.c.b16 %v549, %v547
    %614 = vmatpush.bf16.msra.mxu0 %v564
    %615 = vmatpush.bf16.msra.mxu0 %v562
    %616 = vmatpush.bf16.msra.mxu0 %v560
    %617 = vmatpush.bf16.msra.mxu0 %v558
    %618 = vmatpush.bf16.msra.mxu0 %v556
    %619 = vmatpush.bf16.msra.mxu0 %v554
    %620 = vmatpush.bf16.msra.mxu0 %v552
    %621 = vmatpush.bf16.msra.mxu0 %v550
    %622 = vmatmul.bf16.gmra.mxu0 %v414
    %v623 = vpop.f32.mrf.mxu0
    %v624 = vadd.f32 %v450, %v623
    %v625 = vpop.f32.mrf.mxu0
    %626 = vdwg.mxu0
    %627 = vmatpush.bf16.msra.mxu0 %v580
    %628 = vmatpush.bf16.msra.mxu0 %v578
    %629 = vmatpush.bf16.msra.mxu0 %v576
    %630 = vmatpush.bf16.msra.mxu0 %v574
    %631 = vmatpush.bf16.msra.mxu0 %v572
    %632 = vmatpush.bf16.msra.mxu0 %v570
    %633 = vmatpush.bf16.msra.mxu0 %v568
    %634 = vmatpush.bf16.msra.mxu0 %v566
    %635 = vmatmul.bf16.gmra.mxu0 %v415
    %v636 = vpop.f32.mrf.mxu0
    %v637 = vadd.f32 %v624, %v636
    %v638 = vpop.f32.mrf.mxu0
    %639 = vdwg.mxu0
    %640 = vmatpush.bf16.msra.mxu0 %v565
    %641 = vmatpush.bf16.msra.mxu0 %v563
    %642 = vmatpush.bf16.msra.mxu0 %v561
    %643 = vmatpush.bf16.msra.mxu0 %v559
    %644 = vmatpush.bf16.msra.mxu0 %v557
    %645 = vmatpush.bf16.msra.mxu0 %v555
    %646 = vmatpush.bf16.msra.mxu0 %v553
    %647 = vmatpush.bf16.msra.mxu0 %v551
    %648 = vmatmul.bf16.gmra.mxu0 %v414
    %v649 = vpop.f32.mrf.mxu0
    %v650 = vadd.f32 %v451, %v649
    %v651 = vpop.f32.mrf.mxu0
    %652 = vdwg.mxu0
    %653 = vmatpush.bf16.msra.mxu0 %v581
    %654 = vmatpush.bf16.msra.mxu0 %v579
    %655 = vmatpush.bf16.msra.mxu0 %v577
    %656 = vmatpush.bf16.msra.mxu0 %v575
    %657 = vmatpush.bf16.msra.mxu0 %v573
    %658 = vmatpush.bf16.msra.mxu0 %v571
    %659 = vmatpush.bf16.msra.mxu0 %v569
    %660 = vmatpush.bf16.msra.mxu0 %v567
    %661 = vmatmul.bf16.gmra.mxu0 %v415
    %v662 = vpop.f32.mrf.mxu0
    %v663 = vadd.f32 %v650, %v662
    %v664 = vpop.f32.mrf.mxu0
    %665 = vdwg.mxu0
    %v666 = vmax.f32 %v637, 0.0
    %v667 = vmax.f32 %v663, 0.0
    %v668 = vpack.c.bf16 %v666, %v666
    %v669 = vpack.c.bf16 %v667, %v667
    %v670 = vld [vmem:[%s5] sm:$0xff]
    %v671 = vld [vmem:[%s5 + $0x8] sm:$0xff]
    %v672 = vld [vmem:[%s5 + $0x10] sm:$0xff]
    %v673 = vld [vmem:[%s5 + $0x18] sm:$0xff]
    %v674 = vld [vmem:[%s5 + $0x20] sm:$0xff]
    %v675 = vld [vmem:[%s5 + $0x28] sm:$0xff]
    %v676 = vld [vmem:[%s5 + $0x30] sm:$0xff]
    %v677 = vld [vmem:[%s5 + $0x38] sm:$0xff]
    %v678 = vld [vmem:[%s5 + $0x40] sm:$0xff]
    %v679 = vld [vmem:[%s5 + $0x48] sm:$0xff]
    %v680 = vld [vmem:[%s5 + $0x50] sm:$0xff]
    %v681 = vld [vmem:[%s5 + $0x58] sm:$0xff]
    %v682 = vld [vmem:[%s5 + $0x60] sm:$0xff]
    %v683 = vld [vmem:[%s5 + $0x68] sm:$0xff]
    %v684 = vld [vmem:[%s5 + $0x70] sm:$0xff]
    %v685 = vld [vmem:[%s5 + $0x78] sm:$0xff]
    %v686 = vld [vmem:[%s5 + $0x80] sm:$0xff]
    %v687 = vld [vmem:[%s5 + $0x88] sm:$0xff]
    %v688 = vld [vmem:[%s5 + $0x90] sm:$0xff]
    %v689 = vld [vmem:[%s5 + $0x98] sm:$0xff]
    %v690 = vld [vmem:[%s5 + $0xa0] sm:$0xff]
    %v691 = vld [vmem:[%s5 + $0xa8] sm:$0xff]
    %v692 = vld [vmem:[%s5 + $0xb0] sm:$0xff]
    %v693 = vld [vmem:[%s5 + $0xb8] sm:$0xff]
    %v694 = vld [vmem:[%s5 + $0xc0] sm:$0xff]
    %v695 = vld [vmem:[%s5 + $0xc8] sm:$0xff]
    %v696 = vld [vmem:[%s5 + $0xd0] sm:$0xff]
    %v697 = vld [vmem:[%s5 + $0xd8] sm:$0xff]
    %v698 = vld [vmem:[%s5 + $0xe0] sm:$0xff]
    %v699 = vld [vmem:[%s5 + $0xe8] sm:$0xff]
    %v700 = vld [vmem:[%s5 + $0xf0] sm:$0xff]
    %v701 = vld [vmem:[%s5 + $0xf8] sm:$0xff]
    %v702 = vld [vmem:[%s6] sm:$0x3]
    %v704 = vperm.slane %v702, 0
    %v705 = vperm.slane %v702, 1
    %v740 = vunpack.c.l.b16 %v670
    %v741 = vunpack.c.h.b16 %v670
    %v742 = vunpack.c.l.b16 %v671
    %v743 = vunpack.c.h.b16 %v671
    %v744 = vunpack.c.l.b16 %v672
    %v745 = vunpack.c.h.b16 %v672
    %v746 = vunpack.c.l.b16 %v673
    %v747 = vunpack.c.h.b16 %v673
    %v748 = vunpack.c.l.b16 %v674
    %v749 = vunpack.c.h.b16 %v674
    %v750 = vunpack.c.l.b16 %v675
    %v751 = vunpack.c.h.b16 %v675
    %v752 = vunpack.c.l.b16 %v676
    %v753 = vunpack.c.h.b16 %v676
    %v754 = vunpack.c.l.b16 %v677
    %v755 = vunpack.c.h.b16 %v677
    %v756 = vunpack.c.l.b16 %v678
    %v757 = vunpack.c.h.b16 %v678
    %v758 = vunpack.c.l.b16 %v679
    %v759 = vunpack.c.h.b16 %v679
    %v760 = vunpack.c.l.b16 %v680
    %v761 = vunpack.c.h.b16 %v680
    %v762 = vunpack.c.l.b16 %v681
    %v763 = vunpack.c.h.b16 %v681
    %v764 = vunpack.c.l.b16 %v682
    %v765 = vunpack.c.h.b16 %v682
    %v766 = vunpack.c.l.b16 %v683
    %v767 = vunpack.c.h.b16 %v683
    %v768 = vunpack.c.l.b16 %v684
    %v769 = vunpack.c.h.b16 %v684
    %v770 = vunpack.c.l.b16 %v685
    %v771 = vunpack.c.h.b16 %v685
    %v772 = vunpack.c.l.b16 %v686
    %v773 = vunpack.c.h.b16 %v686
    %v774 = vunpack.c.l.b16 %v687
    %v775 = vunpack.c.h.b16 %v687
    %v776 = vunpack.c.l.b16 %v688
    %v777 = vunpack.c.h.b16 %v688
    %v778 = vunpack.c.l.b16 %v689
    %v779 = vunpack.c.h.b16 %v689
    %v780 = vunpack.c.l.b16 %v690
    %v781 = vunpack.c.h.b16 %v690
    %v782 = vunpack.c.l.b16 %v691
    %v783 = vunpack.c.h.b16 %v691
    %v784 = vunpack.c.l.b16 %v692
    %v785 = vunpack.c.h.b16 %v692
    %v786 = vunpack.c.l.b16 %v693
    %v787 = vunpack.c.h.b16 %v693
    %v788 = vunpack.c.l.b16 %v694
    %v789 = vunpack.c.h.b16 %v694
    %v790 = vunpack.c.l.b16 %v695
    %v791 = vunpack.c.h.b16 %v695
    %v792 = vunpack.c.l.b16 %v696
    %v793 = vunpack.c.h.b16 %v696
    %v794 = vunpack.c.l.b16 %v697
    %v795 = vunpack.c.h.b16 %v697
    %v796 = vunpack.c.l.b16 %v698
    %v797 = vunpack.c.h.b16 %v698
    %v798 = vunpack.c.l.b16 %v699
    %v799 = vunpack.c.h.b16 %v699
    %v800 = vunpack.c.l.b16 %v700
    %v801 = vunpack.c.h.b16 %v700
    %v802 = vunpack.c.l.b16 %v701
    %v803 = vunpack.c.h.b16 %v701
    %v804 = vpack.c.b16 %v742, %v740
    %v805 = vpack.c.b16 %v743, %v741
    %v806 = vpack.c.b16 %v746, %v744
    %v807 = vpack.c.b16 %v747, %v745
    %v808 = vpack.c.b16 %v750, %v748
    %v809 = vpack.c.b16 %v751, %v749
    %v810 = vpack.c.b16 %v754, %v752
    %v811 = vpack.c.b16 %v755, %v753
    %v812 = vpack.c.b16 %v758, %v756
    %v813 = vpack.c.b16 %v759, %v757
    %v814 = vpack.c.b16 %v762, %v760
    %v815 = vpack.c.b16 %v763, %v761
    %v816 = vpack.c.b16 %v766, %v764
    %v817 = vpack.c.b16 %v767, %v765
    %v818 = vpack.c.b16 %v770, %v768
    %v819 = vpack.c.b16 %v771, %v769
    %v820 = vpack.c.b16 %v774, %v772
    %v821 = vpack.c.b16 %v775, %v773
    %v822 = vpack.c.b16 %v778, %v776
    %v823 = vpack.c.b16 %v779, %v777
    %v824 = vpack.c.b16 %v782, %v780
    %v825 = vpack.c.b16 %v783, %v781
    %v826 = vpack.c.b16 %v786, %v784
    %v827 = vpack.c.b16 %v787, %v785
    %v828 = vpack.c.b16 %v790, %v788
    %v829 = vpack.c.b16 %v791, %v789
    %v830 = vpack.c.b16 %v794, %v792
    %v831 = vpack.c.b16 %v795, %v793
    %v832 = vpack.c.b16 %v798, %v796
    %v833 = vpack.c.b16 %v799, %v797
    %v834 = vpack.c.b16 %v802, %v800
    %v835 = vpack.c.b16 %v803, %v801
    %868 = vmatpush.bf16.msra.mxu0 %v818
    %869 = vmatpush.bf16.msra.mxu0 %v816
    %870 = vmatpush.bf16.msra.mxu0 %v814
    %871 = vmatpush.bf16.msra.mxu0 %v812
    %872 = vmatpush.bf16.msra.mxu0 %v810
    %873 = vmatpush.bf16.msra.mxu0 %v808
    %874 = vmatpush.bf16.msra.mxu0 %v806
    %875 = vmatpush.bf16.msra.mxu0 %v804
    %876 = vmatmul.bf16.gmra.mxu0 %v668
    %v877 = vpop.f32.mrf.mxu0
    %v878 = vadd.f32 %v704, %v877
    %v879 = vpop.f32.mrf.mxu0
    %880 = vdwg.mxu0
    %881 = vmatpush.bf16.msra.mxu0 %v834
    %882 = vmatpush.bf16.msra.mxu0 %v832
    %883 = vmatpush.bf16.msra.mxu0 %v830
    %884 = vmatpush.bf16.msra.mxu0 %v828
    %885 = vmatpush.bf16.msra.mxu0 %v826
    %886 = vmatpush.bf16.msra.mxu0 %v824
    %887 = vmatpush.bf16.msra.mxu0 %v822
    %888 = vmatpush.bf16.msra.mxu0 %v820
    %889 = vmatmul.bf16.gmra.mxu0 %v669
    %v890 = vpop.f32.mrf.mxu0
    %v891 = vadd.f32 %v878, %v890
    %v892 = vpop.f32.mrf.mxu0
    %893 = vdwg.mxu0
    %894 = vmatpush.bf16.msra.mxu0 %v819
    %895 = vmatpush.bf16.msra.mxu0 %v817
    %896 = vmatpush.bf16.msra.mxu0 %v815
    %897 = vmatpush.bf16.msra.mxu0 %v813
    %898 = vmatpush.bf16.msra.mxu0 %v811
    %899 = vmatpush.bf16.msra.mxu0 %v809
    %900 = vmatpush.bf16.msra.mxu0 %v807
    %901 = vmatpush.bf16.msra.mxu0 %v805
    %902 = vmatmul.bf16.gmra.mxu0 %v668
    %v903 = vpop.f32.mrf.mxu0
    %v904 = vadd.f32 %v705, %v903
    %v905 = vpop.f32.mrf.mxu0
    %906 = vdwg.mxu0
    %907 = vmatpush.bf16.msra.mxu0 %v835
    %908 = vmatpush.bf16.msra.mxu0 %v833
    %909 = vmatpush.bf16.msra.mxu0 %v831
    %910 = vmatpush.bf16.msra.mxu0 %v829
    %911 = vmatpush.bf16.msra.mxu0 %v827
    %912 = vmatpush.bf16.msra.mxu0 %v825
    %913 = vmatpush.bf16.msra.mxu0 %v823
    %914 = vmatpush.bf16.msra.mxu0 %v821
    %915 = vmatmul.bf16.gmra.mxu0 %v669
    %v916 = vpop.f32.mrf.mxu0
    %v917 = vadd.f32 %v904, %v916
    %v918 = vpop.f32.mrf.mxu0
    %919 = vdwg.mxu0
    %920 = vst [vmem:[#allocation2] sm:$0xff] %v891
    %921 = vst [vmem:[#allocation2 + $0x8] sm:$0xff] %v917
    // Predicated region
    $region30: #{_forward_padded.1} parent=1 // pred_check
      _
    $region31: #{_forward_padded.1} parent=1 // pred_check_branch
      %923 = sbr.rel (0) target = $region33
    $region32: #{_forward_padded.1} parent=1 // pred_region
      %925 = vsyncadd [#allocation3], 0
      %s927 = sshll.u32 [#allocation2], 4
      %s928 = int_to_ptr.vmem [resolvable:$true] %s927
      %s929 = sshll.u32 %s7, 4
      %s930 = int_to_ptr.hbm [resolvable:$true] %s929
      %932 = dma.vmem_to_hbm [thread:$0]  %s928, 256, %s930, [#allocation3]
    $region33: #{_forward_padded.1} parent=1 // pred_fallthru
      _
    // Predicated region
    $region34: #{_forward_padded.1} parent=1 // pred_check
      _
    $region35: #{_forward_padded.1} parent=1 // pred_check_branch
      %934 = sbr.rel (0) target = $region37
    $region36: #{_forward_padded.1} parent=1 // pred_region
      %936 = dma.done [#allocation3], 256
    $region37: #{_forward_padded.1} parent=1 // pred_fallthru
      _
    %937 = vsyncpa [#allocation3], 1

</llo_original>
